<compile_context>
chip_gen: v5e
topology: v5e:2x2
jax: 0.10.0
libtpu: 0.0.40
codegen_flags: <defaults>
</compile_context>

<pallas_src>
import jax
import jax.numpy as jnp
from jax import lax
from jax.experimental import pallas as pl
from jax.experimental.pallas import tpu as pltpu

# ---------------- model hyper-params (synthetic, deterministic) -------------
B = 2             # batch
CIN = 3           # image channels
H = W = 16        # spatial
K = 3             # conv kernel (padding=1 -> SAME)
BB_OUT = 32       # bb_output_size (backbone feature size)
DATA_DIM = 12     # extra tabular features (module hard-codes "+ 12")
HID = 64          # fc1 width
NUM_CLASSES = 10

# ---------------- packed layout constants ------------------------------------
BP = ((B + 7) // 8) * 8                 # batch rows padded to sublane multiple
IMG_FLAT = CIN * H * W                  # 768 (multiple of 128)
DATA_PAD = 128                          # data block padded to one lane slab
FEAT_W = IMG_FLAT + DATA_PAD            # 896-lane activation array
OUT_PAD = 128                           # lane-dense output width
HID_PAD = 128                           # fc1 output padded to a full lane slab

# wconv array: rows 0:768 = Wfold (folded conv+GAP), row 768 = bc broadcast row
WCONV_ROWS = ((IMG_FLAT + 1 + 7) // 8) * 8      # 776

# whead array (width 128), all block starts 8-aligned:
R_W1A = 0                               # rows   0: 32  w1[:, :32].T  (lanes 0:64)
R_W1B = R_W1A + BB_OUT                  # rows  32:160  w1[:, 32:].T padded to 128 rows
R_B1 = R_W1B + DATA_PAD                 # row  160      b1            (lanes 0:64)
R_W2 = ((R_B1 + 1 + 7) // 8) * 8        # rows 168:296  w2.T padded to 128 rows
R_B2 = R_W2 + HID_PAD                   # row  296      b2            (lanes 0:10)
R_TOTAL = ((R_B2 + 1 + 7) // 8) * 8     # 304 rows total


# ------------------------------ Pallas kernel -------------------------------
def metanet_kernel(feat_ref, wconv_ref, whead_ref, out_ref):
    # feat lanes 0:768   -> flattened image (c,h,w)-major
    # feat lanes 768:896 -> tabular data (lanes 12:128 zero)
    img = feat_ref[:, 0:IMG_FLAT]                       # (BP, 768)
    dat = feat_ref[:, IMG_FLAT:FEAT_W]                  # (BP, 128)

    # Backbone: conv(3x3, SAME) + GAP folded into one matmul + bias row.
    bb = jnp.dot(img, wconv_ref[0:IMG_FLAT, :],
                 preferred_element_type=jnp.float32)    # (BP, 32)
    x1 = jnp.maximum(bb + wconv_ref[IMG_FLAT:IMG_FLAT + 1, :], 0.0)

    # fc1 on cat(x1, data): split matmul, all operands full lane width.
    h = (jnp.dot(x1, whead_ref[R_W1A:R_W1A + BB_OUT, :],
                 preferred_element_type=jnp.float32)
         + jnp.dot(dat, whead_ref[R_W1B:R_W1B + DATA_PAD, :],
                   preferred_element_type=jnp.float32)
         + whead_ref[R_B1:R_B1 + 1, :])
    h = jnp.maximum(h, 0.0)                             # (BP, 128), lanes 64:128 == 0

    # fc2 + b2; lane-dense (BP, 128) store.
    out_ref[...] = (jnp.dot(h, whead_ref[R_W2:R_W2 + HID_PAD, :],
                            preferred_element_type=jnp.float32)
                    + whead_ref[R_B2:R_B2 + 1, :])


# --------------------- one-time parameter packing (hoisted) ------------------
def prepare_params(params):
    """Pack the module parameters into two DMA-ready arrays. Runs ONCE."""
    wc, bc, w1, b1, w2, b2 = (params[k] for k in
                              ("wc", "bc", "w1", "b1", "w2", "b2"))

    # Fixed averaging masks: mp[b,c,kh,kw] = (1/HW) * sum_{r,s} mask_h[kh,r] *
    # mask_w[kw,s] * image[b,c,r,s]  (SAME zero-padding, 3x3 window shifts).
    r = jnp.arange(H)[None, :]
    s = jnp.arange(W)[None, :]
    kh = jnp.arange(K)[:, None]
    kw = jnp.arange(K)[:, None]
    mask_h = ((r >= kh - 1) & (r <= kh + H - 2)).astype(jnp.float32)   # (K, H)
    mask_w = ((s >= kw - 1) & (s <= kw + W - 2)).astype(jnp.float32)   # (K, W)
    m_sp = (mask_h[:, None, :, None] * mask_w[None, :, None, :]) / (H * W)  # (K,K,H,W)

    # Wfold[(c,r,s), o] = sum_{kh,kw} m_sp[kh,kw,r,s] * wc[o,c,kh,kw]
    wfold = jnp.einsum("klrs,ockl->crso", m_sp, wc,
                       precision=lax.Precision.HIGHEST
                       ).reshape(IMG_FLAT, BB_OUT)

    wconv = jnp.zeros((WCONV_ROWS, BB_OUT), jnp.float32)
    wconv = wconv.at[:IMG_FLAT, :].set(wfold)
    wconv = wconv.at[IMG_FLAT, :].set(bc)

    whead = jnp.zeros((R_TOTAL, OUT_PAD), jnp.float32)
    whead = whead.at[R_W1A:R_W1A + BB_OUT, :HID].set(w1[:, :BB_OUT].T)
    whead = whead.at[R_W1B:R_W1B + DATA_DIM, :HID].set(w1[:, BB_OUT:].T)
    whead = whead.at[R_B1, :HID].set(b1)
    whead = whead.at[R_W2:R_W2 + HID, :NUM_CLASSES].set(w2.T)
    whead = whead.at[R_B2, :NUM_CLASSES].set(b2)
    return wconv, whead


# ------------------------------ per-call forward ------------------------------
def metanet_forward(image, data, wconv, whead):
    """image: (B, CIN, H, W) NCHW, data: (B, 12) -> logits (B, NUM_CLASSES)."""
    feat = jnp.zeros((BP, FEAT_W), jnp.float32)
    feat = feat.at[:B, :IMG_FLAT].set(image.reshape(B, IMG_FLAT))
    feat = feat.at[:B, IMG_FLAT:IMG_FLAT + DATA_DIM].set(data)

    vmem = pl.BlockSpec(memory_space=pltpu.MemorySpace.VMEM)
    out_padded = pl.pallas_call(
        metanet_kernel,
        out_shape=jax.ShapeDtypeStruct((BP, OUT_PAD), jnp.float32),
        in_specs=[vmem, vmem, vmem],
        out_specs=vmem,
    )(feat, wconv, whead)
    return out_padded[:B, :NUM_CLASSES]


metanet_forward_jit = jax.jit(metanet_forward)


# ------------------------------ reference (plain JAX) ------------------------
def metanet_reference(image, data, params):
    wc, bc, w1, b1, w2, b2 = (params[k] for k in
                              ("wc", "bc", "w1", "b1", "w2", "b2"))
    conv = lax.conv_general_dilated(
        image, wc, window_strides=(1, 1), padding="SAME",
        dimension_numbers=("NCHW", "OIHW", "NCHW")) + bc.reshape(1, -1, 1, 1)
    bb = conv.mean(axis=(2, 3))                          # GAP -> (B, BB_OUT)
    x1 = jnp.maximum(bb, 0.0)
    x = jnp.concatenate([x1, data], axis=1)
    h = jnp.maximum(x @ w1.T + b1, 0.0)
    return h @ w2.T + b2


# ------------------------------ main ----------------------------------------
if __name__ == "__main__":
    key = jax.random.PRNGKey(0)
    k_img, k_data, k_wc, k_w1, k_w2 = jax.random.split(key, 5)

    image = jax.random.normal(k_img, (B, CIN, H, W), dtype=jnp.float32)
    data = jax.random.uniform(k_data, (B, DATA_DIM), dtype=jnp.float32)

    # weights_init: Linear/Conv weights ~ U[0,1), biases = 0.
    params = {
        "wc": jax.random.uniform(k_wc, (BB_OUT, CIN, K, K), dtype=jnp.float32),
        "bc": jnp.zeros((BB_OUT,), jnp.float32),
        "w1": jax.random.uniform(k_w1, (HID, BB_OUT + DATA_DIM),
                                 dtype=jnp.float32),
        "b1": jnp.zeros((HID,), jnp.float32),
        "w2": jax.random.uniform(k_w2, (NUM_CLASSES, HID), dtype=jnp.float32),
        "b2": jnp.zeros((NUM_CLASSES,), jnp.float32),
    }

    # One-time packing at parameter-load time (outside the per-call hot path).
    wconv, whead = jax.block_until_ready(prepare_params(params))

    out = jax.block_until_ready(metanet_forward_jit(image, data, wconv, whead))
    ref = jax.block_until_ready(metanet_reference(image, data, params))

    assert out.shape == (B, NUM_CLASSES)
    assert jnp.allclose(out, ref, rtol=1e-4, atol=1e-4), \
        f"mismatch: max abs err = {jnp.max(jnp.abs(out - ref))}"
    print("KERNEL_OK")
</pallas_src>

<mosaic_0001>
module attributes {stable_mosaic.version = 11 : i64} {
  func.func @metanet_kernel(%arg0: memref<8x896xf32, #tpu.memory_space<vmem>>, %arg1: memref<776x32xf32, #tpu.memory_space<vmem>>, %arg2: memref<304x128xf32, #tpu.memory_space<vmem>>, %arg3: memref<8x128xf32, #tpu.memory_space<vmem>>) attributes {dimension_semantics = [], scalar_prefetch = 0 : i64, scratch_operands = 0 : i64, tpu.core_type = #tpu.core_type<tc>} {
    %c0 = arith.constant 0 : index
    %c0_0 = arith.constant 0 : index
    %0 = vector.load %arg0[%c0, %c0_0] : memref<8x896xf32, #tpu.memory_space<vmem>>, vector<8x768xf32>
    %c0_1 = arith.constant 0 : index
    %c768 = arith.constant 768 : index
    %1 = vector.load %arg0[%c0_1, %c768] : memref<8x896xf32, #tpu.memory_space<vmem>>, vector<8x128xf32>
    %c0_2 = arith.constant 0 : index
    %c0_3 = arith.constant 0 : index
    %2 = vector.load %arg1[%c0_2, %c0_3] : memref<776x32xf32, #tpu.memory_space<vmem>>, vector<768x32xf32>
    %cst = arith.constant dense<0.000000e+00> : vector<8x32xf32>
    %3 = tpu.matmul %0, %2, %cst {dimension_numbers = #tpu.dot_dimension_numbers<[1], [0], [0], [1], [0, 0, 1, 1], [], []>} : vector<8x768xf32>, vector<768x32xf32>, vector<8x32xf32> -> vector<8x32xf32>
    %c768_4 = arith.constant 768 : index
    %c0_5 = arith.constant 0 : index
    %4 = vector.load %arg1[%c768_4, %c0_5] : memref<776x32xf32, #tpu.memory_space<vmem>>, vector<1x32xf32>
    %5 = vector.broadcast %4 : vector<1x32xf32> to vector<8x32xf32>
    %6 = arith.addf %3, %5 : vector<8x32xf32>
    %cst_6 = arith.constant 0.000000e+00 : f32
    %7 = vector.broadcast %cst_6 : f32 to vector<8x32xf32>
    %8 = arith.maximumf %6, %7 : vector<8x32xf32>
    %c0_7 = arith.constant 0 : index
    %c0_8 = arith.constant 0 : index
    %9 = vector.load %arg2[%c0_7, %c0_8] : memref<304x128xf32, #tpu.memory_space<vmem>>, vector<32x128xf32>
    %cst_9 = arith.constant dense<0.000000e+00> : vector<8x128xf32>
    %10 = tpu.matmul %8, %9, %cst_9 {dimension_numbers = #tpu.dot_dimension_numbers<[1], [0], [0], [1], [0, 0, 1, 1], [], []>} : vector<8x32xf32>, vector<32x128xf32>, vector<8x128xf32> -> vector<8x128xf32>
    %c32 = arith.constant 32 : index
    %c0_10 = arith.constant 0 : index
    %11 = vector.load %arg2[%c32, %c0_10] : memref<304x128xf32, #tpu.memory_space<vmem>>, vector<128x128xf32>
    %cst_11 = arith.constant dense<0.000000e+00> : vector<8x128xf32>
    %12 = tpu.matmul %1, %11, %cst_11 {dimension_numbers = #tpu.dot_dimension_numbers<[1], [0], [0], [1], [0, 0, 1, 1], [], []>} : vector<8x128xf32>, vector<128x128xf32>, vector<8x128xf32> -> vector<8x128xf32>
    %13 = arith.addf %10, %12 : vector<8x128xf32>
    %c160 = arith.constant 160 : index
    %c0_12 = arith.constant 0 : index
    %14 = vector.load %arg2[%c160, %c0_12] : memref<304x128xf32, #tpu.memory_space<vmem>>, vector<1x128xf32>
    %15 = vector.broadcast %14 : vector<1x128xf32> to vector<8x128xf32>
    %16 = arith.addf %13, %15 : vector<8x128xf32>
    %cst_13 = arith.constant 0.000000e+00 : f32
    %17 = vector.broadcast %cst_13 : f32 to vector<8x128xf32>
    %18 = arith.maximumf %16, %17 : vector<8x128xf32>
    %c168 = arith.constant 168 : index
    %c0_14 = arith.constant 0 : index
    %19 = vector.load %arg2[%c168, %c0_14] : memref<304x128xf32, #tpu.memory_space<vmem>>, vector<128x128xf32>
    %cst_15 = arith.constant dense<0.000000e+00> : vector<8x128xf32>
    %20 = tpu.matmul %18, %19, %cst_15 {dimension_numbers = #tpu.dot_dimension_numbers<[1], [0], [0], [1], [0, 0, 1, 1], [], []>} : vector<8x128xf32>, vector<128x128xf32>, vector<8x128xf32> -> vector<8x128xf32>
    %c296 = arith.constant 296 : index
    %c0_16 = arith.constant 0 : index
    %21 = vector.load %arg2[%c296, %c0_16] : memref<304x128xf32, #tpu.memory_space<vmem>>, vector<1x128xf32>
    %22 = vector.broadcast %21 : vector<1x128xf32> to vector<8x128xf32>
    %23 = arith.addf %20, %22 : vector<8x128xf32>
    %c0_17 = arith.constant 0 : index
    %c0_18 = arith.constant 0 : index
    %24 = vector.load %arg3[%c0_17, %c0_18] : memref<8x128xf32, #tpu.memory_space<vmem>>, vector<8x128xf32>
    tpu.vector_store %arg3[%c0_17, %c0_18], %23 {strides = array<i32>} : memref<8x128xf32, #tpu.memory_space<vmem>>, vector<8x128xf32>,
    return
  }
}

</mosaic_0001>

<llo_original>
// kernel: metanet_forward.1
$region0: #{metanet_forward.1}
  #allocation0 [shape = 'u32[]', space=smem, size = 0x4, offset = 0x4, fixed_abs, tag = 'smem constant byte address 0x4 - core index']
  #allocation1 [shape = 'u32[72,128]{1,0:T(1,128)}', space=vmem, size = 0x9000, scoped, tag = 'internal scratch']
  %s0 = inlined_call_operand.vmem [shape: f32[8,896], index: 0, kind: input, shape index: {}]
  %s1 = inlined_call_operand.vmem [shape: f32[776,32], index: 1, kind: input, shape index: {}]
  %s2 = inlined_call_operand.vmem [shape: f32[304,128], index: 2, kind: input, shape index: {}]
  %s3 = inlined_call_operand.vmem [shape: f32[8,128], index: 3, kind: output, shape index: {}]
  %s4 = sld [smem:[#allocation0]]
  $region22: #{metanet_forward.1} parent=0
    _
  %s6 = ssub.s32 1, %s4
  %s7 = scalar_select 0, %s6, %s4
  // Predicated region
  $region2: #{metanet_forward.1} parent=0 // pred_check
    _
  $region3: #{metanet_forward.1} parent=0 // pred_check_branch
    %9 = sbr.rel (0) target = $region5
  $region4: #{metanet_forward.1} parent=0 // pred_region
    _
  $region5: #{metanet_forward.1} parent=0 // pred_fallthru
    _
  // Predicated region
  $region6: #{metanet_forward.1} parent=0 // pred_check
    _
  $region7: #{metanet_forward.1} parent=0 // pred_check_branch
    %11 = sbr.rel (0) target = $region9
  $region8: #{metanet_forward.1} parent=0 // pred_region
    _
  $region9: #{metanet_forward.1} parent=0 // pred_fallthru
    _
  // Predicated region
  $region10: #{metanet_forward.1} parent=0 // pred_check
    _
  $region11: #{metanet_forward.1} parent=0 // pred_check_branch
    %13 = sbr.rel (0) target = $region13
  $region12: #{metanet_forward.1} parent=0 // pred_region
    _
  $region13: #{metanet_forward.1} parent=0 // pred_fallthru
    _
  %v14 = vld [vmem:[%s0] sm:$0xff]
  %v15 = vld [vmem:[%s0 + $0x8] sm:$0xff]
  %v16 = vld [vmem:[%s0 + $0x10] sm:$0xff]
  %v17 = vld [vmem:[%s0 + $0x18] sm:$0xff]
  %v18 = vld [vmem:[%s0 + $0x20] sm:$0xff]
  %v19 = vld [vmem:[%s0 + $0x28] sm:$0xff]
  %v20 = vld [vmem:[%s0 + $0x30] sm:$0xff]
  %v21 = vld [vmem:[%s1] sm:$0xff]
  %v22 = vld [vmem:[%s1 + $0x8] sm:$0xff]
  %v23 = vld [vmem:[%s1 + $0x10] sm:$0xff]
  %v24 = vld [vmem:[%s1 + $0x18] sm:$0xff]
  %v25 = vld [vmem:[%s1 + $0x20] sm:$0xff]
  %v26 = vld [vmem:[%s1 + $0x28] sm:$0xff]
  %v27 = vld [vmem:[%s1 + $0x30] sm:$0xff]
  %v28 = vld [vmem:[%s1 + $0x38] sm:$0xff]
  %v29 = vld [vmem:[%s1 + $0x40] sm:$0xff]
  %v30 = vld [vmem:[%s1 + $0x48] sm:$0xff]
  %v31 = vld [vmem:[%s1 + $0x50] sm:$0xff]
  %v32 = vld [vmem:[%s1 + $0x58] sm:$0xff]
  %v33 = vld [vmem:[%s1 + $0x60] sm:$0xff]
  %v34 = vld [vmem:[%s1 + $0x68] sm:$0xff]
  %v35 = vld [vmem:[%s1 + $0x70] sm:$0xff]
  %v36 = vld [vmem:[%s1 + $0x78] sm:$0xff]
  %v37 = vld [vmem:[%s1 + $0x80] sm:$0xff]
  %v38 = vld [vmem:[%s1 + $0x88] sm:$0xff]
  %v39 = vld [vmem:[%s1 + $0x90] sm:$0xff]
  %v40 = vld [vmem:[%s1 + $0x98] sm:$0xff]
  %v41 = vld [vmem:[%s1 + $0xa0] sm:$0xff]
  %v42 = vld [vmem:[%s1 + $0xa8] sm:$0xff]
  %v43 = vld [vmem:[%s1 + $0xb0] sm:$0xff]
  %v44 = vld [vmem:[%s1 + $0xb8] sm:$0xff]
  %v45 = vld [vmem:[%s1 + $0xc0] sm:$0xff]
  %v46 = vld [vmem:[%s1 + $0xc8] sm:$0xff]
  %v47 = vld [vmem:[%s1 + $0xd0] sm:$0xff]
  %v48 = vld [vmem:[%s1 + $0xd8] sm:$0xff]
  %v49 = vld [vmem:[%s1 + $0xe0] sm:$0xff]
  %v50 = vld [vmem:[%s1 + $0xe8] sm:$0xff]
  %v51 = vld [vmem:[%s1 + $0xf0] sm:$0xff]
  %v52 = vld [vmem:[%s1 + $0xf8] sm:$0xff]
  %v53 = vld [vmem:[%s1 + $0x100] sm:$0xff]
  %v54 = vld [vmem:[%s1 + $0x108] sm:$0xff]
  %v55 = vld [vmem:[%s1 + $0x110] sm:$0xff]
  %v56 = vld [vmem:[%s1 + $0x118] sm:$0xff]
  %v57 = vld [vmem:[%s1 + $0x120] sm:$0xff]
  %v58 = vld [vmem:[%s1 + $0x128] sm:$0xff]
  %v59 = vld [vmem:[%s1 + $0x130] sm:$0xff]
  %v60 = vld [vmem:[%s1 + $0x138] sm:$0xff]
  %v61 = vld [vmem:[%s1 + $0x140] sm:$0xff]
  %v62 = vld [vmem:[%s1 + $0x148] sm:$0xff]
  %v63 = vld [vmem:[%s1 + $0x150] sm:$0xff]
  %v64 = vld [vmem:[%s1 + $0x158] sm:$0xff]
  %v65 = vld [vmem:[%s1 + $0x160] sm:$0xff]
  %v66 = vld [vmem:[%s1 + $0x168] sm:$0xff]
  %v67 = vld [vmem:[%s1 + $0x170] sm:$0xff]
  %v68 = vld [vmem:[%s1 + $0x178] sm:$0xff]
  %v69 = vld [vmem:[%s1 + $0x180] sm:$0xff]
  %v70 = vld [vmem:[%s1 + $0x188] sm:$0xff]
  %v71 = vld [vmem:[%s1 + $0x190] sm:$0xff]
  %v72 = vld [vmem:[%s1 + $0x198] sm:$0xff]
  %v73 = vld [vmem:[%s1 + $0x1a0] sm:$0xff]
  %v74 = vld [vmem:[%s1 + $0x1a8] sm:$0xff]
  %v75 = vld [vmem:[%s1 + $0x1b0] sm:$0xff]
  %v76 = vld [vmem:[%s1 + $0x1b8] sm:$0xff]
  %v77 = vld [vmem:[%s1 + $0x1c0] sm:$0xff]
  %v78 = vld [vmem:[%s1 + $0x1c8] sm:$0xff]
  %v79 = vld [vmem:[%s1 + $0x1d0] sm:$0xff]
  %v80 = vld [vmem:[%s1 + $0x1d8] sm:$0xff]
  %v81 = vld [vmem:[%s1 + $0x1e0] sm:$0xff]
  %v82 = vld [vmem:[%s1 + $0x1e8] sm:$0xff]
  %v83 = vld [vmem:[%s1 + $0x1f0] sm:$0xff]
  %v84 = vld [vmem:[%s1 + $0x1f8] sm:$0xff]
  %v85 = vld [vmem:[%s1 + $0x200] sm:$0xff]
  %v86 = vld [vmem:[%s1 + $0x208] sm:$0xff]
  %v87 = vld [vmem:[%s1 + $0x210] sm:$0xff]
  %v88 = vld [vmem:[%s1 + $0x218] sm:$0xff]
  %v89 = vld [vmem:[%s1 + $0x220] sm:$0xff]
  %v90 = vld [vmem:[%s1 + $0x228] sm:$0xff]
  %v91 = vld [vmem:[%s1 + $0x230] sm:$0xff]
  %v92 = vld [vmem:[%s1 + $0x238] sm:$0xff]
  %v93 = vld [vmem:[%s1 + $0x240] sm:$0xff]
  %v94 = vld [vmem:[%s1 + $0x248] sm:$0xff]
  %v95 = vld [vmem:[%s1 + $0x250] sm:$0xff]
  %v96 = vld [vmem:[%s1 + $0x258] sm:$0xff]
  %v97 = vld [vmem:[%s1 + $0x260] sm:$0xff]
  %v98 = vld [vmem:[%s1 + $0x268] sm:$0xff]
  %v99 = vld [vmem:[%s1 + $0x270] sm:$0xff]
  %v100 = vld [vmem:[%s1 + $0x278] sm:$0xff]
  %v101 = vld [vmem:[%s1 + $0x280] sm:$0xff]
  %v102 = vld [vmem:[%s1 + $0x288] sm:$0xff]
  %v103 = vld [vmem:[%s1 + $0x290] sm:$0xff]
  %v104 = vld [vmem:[%s1 + $0x298] sm:$0xff]
  %v105 = vld [vmem:[%s1 + $0x2a0] sm:$0xff]
  %v106 = vld [vmem:[%s1 + $0x2a8] sm:$0xff]
  %v107 = vld [vmem:[%s1 + $0x2b0] sm:$0xff]
  %v108 = vld [vmem:[%s1 + $0x2b8] sm:$0xff]
  %v109 = vld [vmem:[%s1 + $0x2c0] sm:$0xff]
  %v110 = vld [vmem:[%s1 + $0x2c8] sm:$0xff]
  %v111 = vld [vmem:[%s1 + $0x2d0] sm:$0xff]
  %v112 = vld [vmem:[%s1 + $0x2d8] sm:$0xff]
  %v113 = vld [vmem:[%s1 + $0x2e0] sm:$0xff]
  %v114 = vld [vmem:[%s1 + $0x2e8] sm:$0xff]
  %v115 = vld [vmem:[%s1 + $0x2f0] sm:$0xff]
  %v116 = vld [vmem:[%s1 + $0x2f8] sm:$0xff]
  %v117 = vld [vmem:[%s1 + $0x300] sm:$0x1]
  %v118 = vperm.slane %v117, 0
  %119 = vmatpush.msra.mxu0 %v36
  %120 = vmatpush.msra.mxu0 %v35
  %121 = vmatpush.msra.mxu0 %v34
  %122 = vmatpush.msra.mxu0 %v33
  %123 = vmatpush.msra.mxu0 %v32
  %124 = vmatpush.msra.mxu0 %v31
  %125 = vmatpush.msra.mxu0 %v30
  %126 = vmatpush.msra.mxu0 %v29
  %127 = vmatpush.msra.mxu0 %v28
  %128 = vmatpush.msra.mxu0 %v27
  %129 = vmatpush.msra.mxu0 %v26
  %130 = vmatpush.msra.mxu0 %v25
  %131 = vmatpush.msra.mxu0 %v24
  %132 = vmatpush.msra.mxu0 %v23
  %133 = vmatpush.msra.mxu0 %v22
  %134 = vmatpush.msra.mxu0 %v21
  %135 = vmatmul.f32.gmra.mxu0 %v14
  %v136 = vpop.f32.mrf.mxu0
  %v137 = vadd.f32 %v118, %v136
  %138 = vdwg.mxu0
  %139 = vmatpush.msra.mxu0 %v52
  %140 = vmatpush.msra.mxu0 %v51
  %141 = vmatpush.msra.mxu0 %v50
  %142 = vmatpush.msra.mxu0 %v49
  %143 = vmatpush.msra.mxu0 %v48
  %144 = vmatpush.msra.mxu0 %v47
  %145 = vmatpush.msra.mxu0 %v46
  %146 = vmatpush.msra.mxu0 %v45
  %147 = vmatpush.msra.mxu0 %v44
  %148 = vmatpush.msra.mxu0 %v43
  %149 = vmatpush.msra.mxu0 %v42
  %150 = vmatpush.msra.mxu0 %v41
  %151 = vmatpush.msra.mxu0 %v40
  %152 = vmatpush.msra.mxu0 %v39
  %153 = vmatpush.msra.mxu0 %v38
  %154 = vmatpush.msra.mxu0 %v37
  %155 = vmatmul.f32.gmra.mxu0 %v15
  %v156 = vpop.f32.mrf.mxu0
  %v157 = vadd.f32 %v137, %v156
  %158 = vdwg.mxu0
  %159 = vmatpush.msra.mxu0 %v68
  %160 = vmatpush.msra.mxu0 %v67
  %161 = vmatpush.msra.mxu0 %v66
  %162 = vmatpush.msra.mxu0 %v65
  %163 = vmatpush.msra.mxu0 %v64
  %164 = vmatpush.msra.mxu0 %v63
  %165 = vmatpush.msra.mxu0 %v62
  %166 = vmatpush.msra.mxu0 %v61
  %167 = vmatpush.msra.mxu0 %v60
  %168 = vmatpush.msra.mxu0 %v59
  %169 = vmatpush.msra.mxu0 %v58
  %170 = vmatpush.msra.mxu0 %v57
  %171 = vmatpush.msra.mxu0 %v56
  %172 = vmatpush.msra.mxu0 %v55
  %173 = vmatpush.msra.mxu0 %v54
  %174 = vmatpush.msra.mxu0 %v53
  %175 = vmatmul.f32.gmra.mxu0 %v16
  %v176 = vpop.f32.mrf.mxu0
  %v177 = vadd.f32 %v157, %v176
  %178 = vdwg.mxu0
  %179 = vmatpush.msra.mxu0 %v84
  %180 = vmatpush.msra.mxu0 %v83
  %181 = vmatpush.msra.mxu0 %v82
  %182 = vmatpush.msra.mxu0 %v81
  %183 = vmatpush.msra.mxu0 %v80
  %184 = vmatpush.msra.mxu0 %v79
  %185 = vmatpush.msra.mxu0 %v78
  %186 = vmatpush.msra.mxu0 %v77
  %187 = vmatpush.msra.mxu0 %v76
  %188 = vmatpush.msra.mxu0 %v75
  %189 = vmatpush.msra.mxu0 %v74
  %190 = vmatpush.msra.mxu0 %v73
  %191 = vmatpush.msra.mxu0 %v72
  %192 = vmatpush.msra.mxu0 %v71
  %193 = vmatpush.msra.mxu0 %v70
  %194 = vmatpush.msra.mxu0 %v69
  %195 = vmatmul.f32.gmra.mxu0 %v17
  %v196 = vpop.f32.mrf.mxu0
  %v197 = vadd.f32 %v177, %v196
  %198 = vdwg.mxu0
  %199 = vmatpush.msra.mxu0 %v100
  %200 = vmatpush.msra.mxu0 %v99
  %201 = vmatpush.msra.mxu0 %v98
  %202 = vmatpush.msra.mxu0 %v97
  %203 = vmatpush.msra.mxu0 %v96
  %204 = vmatpush.msra.mxu0 %v95
  %205 = vmatpush.msra.mxu0 %v94
  %206 = vmatpush.msra.mxu0 %v93
  %207 = vmatpush.msra.mxu0 %v92
  %208 = vmatpush.msra.mxu0 %v91
  %209 = vmatpush.msra.mxu0 %v90
  %210 = vmatpush.msra.mxu0 %v89
  %211 = vmatpush.msra.mxu0 %v88
  %212 = vmatpush.msra.mxu0 %v87
  %213 = vmatpush.msra.mxu0 %v86
  %214 = vmatpush.msra.mxu0 %v85
  %215 = vmatmul.f32.gmra.mxu0 %v18
  %v216 = vpop.f32.mrf.mxu0
  %v217 = vadd.f32 %v197, %v216
  %218 = vdwg.mxu0
  %219 = vmatpush.msra.mxu0 %v116
  %220 = vmatpush.msra.mxu0 %v115
  %221 = vmatpush.msra.mxu0 %v114
  %222 = vmatpush.msra.mxu0 %v113
  %223 = vmatpush.msra.mxu0 %v112
  %224 = vmatpush.msra.mxu0 %v111
  %225 = vmatpush.msra.mxu0 %v110
  %226 = vmatpush.msra.mxu0 %v109
  %227 = vmatpush.msra.mxu0 %v108
  %228 = vmatpush.msra.mxu0 %v107
  %229 = vmatpush.msra.mxu0 %v106
  %230 = vmatpush.msra.mxu0 %v105
  %231 = vmatpush.msra.mxu0 %v104
  %232 = vmatpush.msra.mxu0 %v103
  %233 = vmatpush.msra.mxu0 %v102
  %234 = vmatpush.msra.mxu0 %v101
  %235 = vmatmul.f32.gmra.mxu0 %v19
  %v236 = vpop.f32.mrf.mxu0
  %v237 = vadd.f32 %v217, %v236
  %238 = vdwg.mxu0
  %v239 = vmax.f32 %v237, 0.0
  %v240 = vld [vmem:[%s2] sm:$0xff]
  %v241 = vld [vmem:[%s2 + $0x8] sm:$0xff]
  %v242 = vld [vmem:[%s2 + $0x10] sm:$0xff]
  %v243 = vld [vmem:[%s2 + $0x18] sm:$0xff]
  %v244 = vld [vmem:[%s2 + $0x20] sm:$0xff]
  %v245 = vld [vmem:[%s2 + $0x28] sm:$0xff]
  %v246 = vld [vmem:[%s2 + $0x30] sm:$0xff]
  %v247 = vld [vmem:[%s2 + $0x38] sm:$0xff]
  %v248 = vld [vmem:[%s2 + $0x40] sm:$0xff]
  %v249 = vld [vmem:[%s2 + $0x48] sm:$0xff]
  %v250 = vld [vmem:[%s2 + $0x50] sm:$0xff]
  %v251 = vld [vmem:[%s2 + $0x58] sm:$0xff]
  %v252 = vld [vmem:[%s2 + $0x60] sm:$0xff]
  %v253 = vld [vmem:[%s2 + $0x68] sm:$0xff]
  %v254 = vld [vmem:[%s2 + $0x70] sm:$0xff]
  %v255 = vld [vmem:[%s2 + $0x78] sm:$0xff]
  %v256 = vld [vmem:[%s2 + $0x80] sm:$0xff]
  %v257 = vld [vmem:[%s2 + $0x88] sm:$0xff]
  %v258 = vld [vmem:[%s2 + $0x90] sm:$0xff]
  %v259 = vld [vmem:[%s2 + $0x98] sm:$0xff]
  %260 = vmatpush.msra.mxu0 %v259
  %261 = vmatpush.msra.mxu0 %v258
  %262 = vmatpush.msra.mxu0 %v257
  %263 = vmatpush.msra.mxu0 %v256
  %264 = vmatpush.msra.mxu0 %v255
  %265 = vmatpush.msra.mxu0 %v254
  %266 = vmatpush.msra.mxu0 %v253
  %267 = vmatpush.msra.mxu0 %v252
  %268 = vmatpush.msra.mxu0 %v251
  %269 = vmatpush.msra.mxu0 %v250
  %270 = vmatpush.msra.mxu0 %v249
  %271 = vmatpush.msra.mxu0 %v248
  %272 = vmatpush.msra.mxu0 %v247
  %273 = vmatpush.msra.mxu0 %v246
  %274 = vmatpush.msra.mxu0 %v245
  %275 = vmatpush.msra.mxu0 %v244
  %276 = vmatmul.f32.gmra.mxu0 %v20
  %v277 = vpop.f32.mrf.mxu0
  %v278 = vadd.f32 0.0, %v277
  %279 = vdwg.mxu0
  %vm280 = vcmask 261120
  %v282 = vsel %vm280, %v239, 0
  %284 = vmatpush.msra.mxu0 0.0
  %285 = vmatpush.msra.mxu0 0.0
  %286 = vmatpush.msra.mxu0 0.0
  %287 = vmatpush.msra.mxu0 0.0
  %288 = vmatpush.msra.mxu0 0.0
  %289 = vmatpush.msra.mxu0 0.0
  %290 = vmatpush.msra.mxu0 0.0
  %291 = vmatpush.msra.mxu0 0.0
  %292 = vmatpush.msra.mxu0 0.0
  %293 = vmatpush.msra.mxu0 0.0
  %294 = vmatpush.msra.mxu0 0.0
  %295 = vmatpush.msra.mxu0 0.0
  %296 = vmatpush.msra.mxu0 %v243
  %297 = vmatpush.msra.mxu0 %v242
  %298 = vmatpush.msra.mxu0 %v241
  %299 = vmatpush.msra.mxu0 %v240
  %300 = vmatmul.f32.gmra.mxu0 %v282
  %v301 = vpop.f32.mrf.mxu0
  %v302 = vadd.f32 %v278, %v301
  %303 = vdwg.mxu0
  %v304 = vld [vmem:[%s2 + $0xa0] sm:$0x1]
  %v305 = vperm.slane %v304, 0
  %v306 = vadd.f32 %v302, %v305
  %v307 = vmax.f32 %v306, 0.0
  %v308 = vld [vmem:[%s2 + $0xa8] sm:$0xff]
  %v309 = vld [vmem:[%s2 + $0xb0] sm:$0xff]
  %v310 = vld [vmem:[%s2 + $0xb8] sm:$0xff]
  %v311 = vld [vmem:[%s2 + $0xc0] sm:$0xff]
  %v312 = vld [vmem:[%s2 + $0xc8] sm:$0xff]
  %v313 = vld [vmem:[%s2 + $0xd0] sm:$0xff]
  %v314 = vld [vmem:[%s2 + $0xd8] sm:$0xff]
  %v315 = vld [vmem:[%s2 + $0xe0] sm:$0xff]
  %v316 = vld [vmem:[%s2 + $0xe8] sm:$0xff]
  %v317 = vld [vmem:[%s2 + $0xf0] sm:$0xff]
  %v318 = vld [vmem:[%s2 + $0xf8] sm:$0xff]
  %v319 = vld [vmem:[%s2 + $0x100] sm:$0xff]
  %v320 = vld [vmem:[%s2 + $0x108] sm:$0xff]
  %v321 = vld [vmem:[%s2 + $0x110] sm:$0xff]
  %v322 = vld [vmem:[%s2 + $0x118] sm:$0xff]
  %v323 = vld [vmem:[%s2 + $0x120] sm:$0xff]
  %v324 = vld [vmem:[%s2 + $0x128] sm:$0x1]
  %v325 = vperm.slane %v324, 0
  %326 = vmatpush.msra.mxu0 %v323
  %327 = vmatpush.msra.mxu0 %v322
  %328 = vmatpush.msra.mxu0 %v321
  %329 = vmatpush.msra.mxu0 %v320
  %330 = vmatpush.msra.mxu0 %v319
  %331 = vmatpush.msra.mxu0 %v318
  %332 = vmatpush.msra.mxu0 %v317
  %333 = vmatpush.msra.mxu0 %v316
  %334 = vmatpush.msra.mxu0 %v315
  %335 = vmatpush.msra.mxu0 %v314
  %336 = vmatpush.msra.mxu0 %v313
  %337 = vmatpush.msra.mxu0 %v312
  %338 = vmatpush.msra.mxu0 %v311
  %339 = vmatpush.msra.mxu0 %v310
  %340 = vmatpush.msra.mxu0 %v309
  %341 = vmatpush.msra.mxu0 %v308
  %342 = vmatmul.f32.gmra.mxu0 %v307
  %v343 = vpop.f32.mrf.mxu0
  %v344 = vadd.f32 %v325, %v343
  %345 = vdwg.mxu0
  %346 = vst [vmem:[%s3] sm:$0xff] %v344
  // Predicated region
  $region14: #{metanet_forward.1} parent=0 // pred_check
    _
  $region15: #{metanet_forward.1} parent=0 // pred_check_branch
    %348 = sbr.rel (0) target = $region17
  $region16: #{metanet_forward.1} parent=0 // pred_region
    _
  $region17: #{metanet_forward.1} parent=0 // pred_fallthru
    _
  // Predicated region
  $region18: #{metanet_forward.1} parent=0 // pred_check
    _
  $region19: #{metanet_forward.1} parent=0 // pred_check_branch
    %350 = sbr.rel (0) target = $region21
  $region20: #{metanet_forward.1} parent=0 // pred_region
    _
  $region21: #{metanet_forward.1} parent=0 // pred_fallthru
    _

</llo_original>
